<compile_context>
chip_gen: v7x
topology: tpu7x:2x2x1
jax: 0.10.0
libtpu: 0.0.40
codegen_flags: <defaults>
</compile_context>

<pallas_src>
import numpy as np
import jax
import jax.numpy as jnp
from jax.experimental import pallas as pl
from jax.experimental.pallas import tpu as pltpu


# ----------------------------------------------------------------------------
# Circuit-unitary construction (trace-time parameter setup, plain numpy).
# Braket big-endian convention: qubit 0 is the leftmost kron factor.
# ----------------------------------------------------------------------------
_I2 = np.eye(2, dtype=np.complex128)
_X = np.array([[0, 1], [1, 0]], dtype=np.complex128)
_Z = np.array([[1, 0], [0, -1]], dtype=np.complex128)
_P0 = np.array([[1, 0], [0, 0]], dtype=np.complex128)
_P1 = np.array([[0, 0], [0, 1]], dtype=np.complex128)


def _ry(theta):
    c, s = np.cos(theta / 2.0), np.sin(theta / 2.0)
    return np.array([[c, -s], [s, c]], dtype=np.complex128)


def _rz(theta):
    return np.array(
        [[np.exp(-1j * theta / 2.0), 0], [0, np.exp(1j * theta / 2.0)]],
        dtype=np.complex128,
    )


def _kron_chain(ops):
    u = ops[0]
    for o in ops[1:]:
        u = np.kron(u, o)
    return u


def _embed_1q(gate, q, n):
    ops = [_I2] * n
    ops[q] = gate
    return _kron_chain(ops)


def _cnot(control, target, n):
    ops0 = [_I2] * n
    ops0[control] = _P0
    ops1 = [_I2] * n
    ops1[control] = _P1
    ops1[target] = _X
    return _kron_chain(ops0) + _kron_chain(ops1)


def build_circuit_unitary(weights, n_qubits):
    """Mirrors cir2 in CirModel.forward (aws-braket path)."""
    dim = 2 ** n_qubits
    U = np.eye(dim, dtype=np.complex128)
    for q in range(n_qubits):
        gates = [
            _embed_1q(_ry(weights[0 + 6 * q]), q, n_qubits),
            _embed_1q(_rz(weights[1 + 6 * q]), q, n_qubits),
            _embed_1q(_ry(weights[2 + 6 * q]), q, n_qubits),
            _cnot(q, (q + 1) % n_qubits, n_qubits),
            _embed_1q(_ry(weights[3 + 6 * q]), q, n_qubits),
            _embed_1q(_rz(weights[4 + 6 * q]), q, n_qubits),
            _embed_1q(_ry(weights[5 + 6 * q]), q, n_qubits),
        ]
        for g in gates:  # later gates multiply on the left
            U = g @ U
    return U


def build_observable(n_qubits):
    """Mirrors cir (Z on qubit 0, I elsewhere). Real ±1 diagonal matrix."""
    ops = [_Z] + [_I2] * (n_qubits - 1)
    return _kron_chain(ops)


def build_fused_quadratic_matrix(weights, n_qubits):
    """A = Re(U^H M U): single real symmetric matrix so rst = x A x^T."""
    U = build_circuit_unitary(weights, n_qubits)
    M = build_observable(n_qubits)
    A = np.real(U.conj().T @ M @ U)
    return U, M, A


# ----------------------------------------------------------------------------
# Pallas kernel: one batch-tile per grid step.
#   xt_ref : (D, TB)  columns are batch samples (lane axis = batch)
#   a_ref  : (D, D)   fused real symmetric quadratic-form matrix
#   o_ref  : (1, TB)  lane-dense per-sample results
# rst[:, b] = sum_d (A @ x_b)[d] * x_b[d]
# ----------------------------------------------------------------------------
def cir_kernel(xt_ref, a_ref, o_ref):
    xt = xt_ref[...]                                                   # (D, TB)
    w = jnp.dot(a_ref[...], xt, preferred_element_type=jnp.float32)    # (D, TB)
    o_ref[...] = jnp.sum(w * xt, axis=0, keepdims=True)                # (1, TB)


def cir_model_forward(x, a, *, tb=128):
    """x: (B, D) float32, a: (D, D) float32 -> (B, 1) float32."""
    B, D = x.shape
    n_tiles = pl.cdiv(B, tb)
    b_pad = n_tiles * tb

    # Layout plumbing in the wrapper: batch on the lane axis, padded to TB.
    xt = jnp.transpose(x).astype(jnp.float32)                          # (D, B)
    if b_pad != B:
        xt = jnp.pad(xt, ((0, 0), (0, b_pad - B)))                     # (D, B_pad)

    out_row = pl.pallas_call(
        cir_kernel,
        out_shape=jax.ShapeDtypeStruct((1, b_pad), jnp.float32),
        grid=(n_tiles,),
        in_specs=[
            pl.BlockSpec((D, tb), lambda i: (0, i)),   # batch tile of x^T
            pl.BlockSpec((D, D), lambda i: (0, 0)),    # A resident across tiles
        ],
        out_specs=pl.BlockSpec((1, tb), lambda i: (0, i)),
        compiler_params=pltpu.CompilerParams(
            dimension_semantics=("parallel",),
        ),
        cost_estimate=pl.CostEstimate(
            flops=2 * D * D * b_pad + 2 * D * b_pad,
            transcendentals=0,
            bytes_accessed=4 * (D * b_pad + D * D + b_pad),
        ),
    )(xt, jnp.asarray(a, dtype=jnp.float32))

    return out_row[0, :B].reshape(B, 1)


# TODO(synk): for D >= 1024 (v7x) / 2048 (v5e/v6e), add K/N tiling of A with a
# VMEM accumulator + pl.when init/finalize instead of a fully-resident (D, D)
# block, and consider bf16 operands with f32 accumulation.


if __name__ == "__main__":
    n_qubits = 4
    dim = 2 ** n_qubits          # 16
    batch = 8

    # Deterministic parameter init (aws-braket path needs 6 * n_qubits angles).
    key = jax.random.PRNGKey(0)
    k_w, k_x = jax.random.split(key)
    weights = np.asarray(
        jax.random.uniform(k_w, (6 * n_qubits,), minval=0.0, maxval=2 * np.pi),
        dtype=np.float64,
    )

    # Build U, M and the fused quadratic-form matrix A (trace-time glue).
    U, M, A = build_fused_quadratic_matrix(weights, n_qubits)
    a_f32 = np.asarray(A, dtype=np.float32)

    # Example input: (batch, 2^n_qubits) amplitude-style vectors.
    x = jax.random.normal(k_x, (batch, dim), dtype=jnp.float32)

    rst = cir_model_forward(x, a_f32)
    rst = jax.block_until_ready(rst)

    # Reference (full complex math, mirrors the PyTorch forward exactly).
    x_np = np.asarray(x, dtype=np.complex64)
    out = U.astype(np.complex64) @ x_np.T
    ref = np.real(np.diag(out.conj().T @ M.astype(np.complex64) @ out)).reshape(-1, 1)

    assert rst.shape == (batch, 1)
    assert np.allclose(np.asarray(rst), ref, rtol=1e-4, atol=1e-4), (rst, ref)

    print("KERNEL_OK")
</pallas_src>

<mosaic_0001>
module attributes {stable_mosaic.version = 11 : i64} {
  func.func @cir_kernel(%arg0: i32, %arg1: memref<16x128xf32, #tpu.memory_space<vmem>>, %arg2: memref<16x16xf32, #tpu.memory_space<vmem>>, %arg3: memref<1x128xf32, #tpu.memory_space<vmem>>) attributes {dimension_semantics = [#tpu.dimension_semantics<parallel>], iteration_bounds = array<i64: 1>, scalar_prefetch = 0 : i64, scratch_operands = 0 : i64, tpu.core_type = #tpu.core_type<tc>, window_params = [{transform_indices = @transform_0, window_bounds = array<i64: 16, 128>}, {pipeline_mode = #tpu.pipeline_mode<synchronous>, transform_indices = @transform_1, window_bounds = array<i64: 16, 16>}, {transform_indices = @transform_2, window_bounds = array<i64: 1, 128>}]} {
    %c0 = arith.constant 0 : index
    %c0_0 = arith.constant 0 : index
    %0 = vector.load %arg1[%c0, %c0_0] : memref<16x128xf32, #tpu.memory_space<vmem>>, vector<16x128xf32>
    %c0_1 = arith.constant 0 : index
    %c0_2 = arith.constant 0 : index
    %1 = vector.load %arg2[%c0_1, %c0_2] : memref<16x16xf32, #tpu.memory_space<vmem>>, vector<16x16xf32>
    %cst = arith.constant dense<0.000000e+00> : vector<16x128xf32>
    %2 = tpu.matmul %1, %0, %cst {dimension_numbers = #tpu.dot_dimension_numbers<[1], [0], [0], [1], [0, 0, 1, 1], [], []>} : vector<16x16xf32>, vector<16x128xf32>, vector<16x128xf32> -> vector<16x128xf32>
    %3 = arith.mulf %2, %0 : vector<16x128xf32>
    %cst_3 = arith.constant dense<0.000000e+00> : vector<128xf32>
    %4 = vector.multi_reduction <add>, %3, %cst_3 [0] : vector<16x128xf32> to vector<128xf32>
    %5 = vector.shape_cast %4 : vector<128xf32> to vector<1x128xf32>
    %c0_4 = arith.constant 0 : index
    %c0_5 = arith.constant 0 : index
    %6 = vector.load %arg3[%c0_4, %c0_5] : memref<1x128xf32, #tpu.memory_space<vmem>>, vector<1x128xf32>
    tpu.vector_store %arg3[%c0_4, %c0_5], %5 {strides = array<i32>} : memref<1x128xf32, #tpu.memory_space<vmem>>, vector<1x128xf32>,
    return
  }
  func.func @transform_0(%arg0: i32) -> (i32, i32) {
    %c0_i32 = arith.constant 0 : i32
    %c0_i32_0 = arith.constant 0 : i32
    return %c0_i32, %arg0 : i32, i32
  }
  func.func @transform_1(%arg0: i32) -> (i32, i32) {
    %c0_i32 = arith.constant 0 : i32
    %c0_i32_0 = arith.constant 0 : i32
    %c0_i32_1 = arith.constant 0 : i32
    return %c0_i32, %c0_i32_0 : i32, i32
  }
  func.func @transform_2(%arg0: i32) -> (i32, i32) {
    %c0_i32 = arith.constant 0 : i32
    %c0_i32_0 = arith.constant 0 : i32
    return %c0_i32, %arg0 : i32, i32
  }
}

</mosaic_0001>

<llo_original>
// kernel: tpu_custom_call.1
$region0: #{tpu_custom_call.1}
  #allocation0 [shape = 'u32[]', space=smem, size = 0x4, offset = 0x4, fixed_abs, tag = 'smem constant byte address 0x4 - core index']
  #allocation1 [shape = 'u32[144,128]{1,0:T(1,128)}', space=vmem, size = 0x12000, scoped, tag = 'internal scratch']
  %s0 = inlined_call_operand.hbm [shape: f32[16,128], index: 0, kind: input, shape index: {}]
  %s1 = inlined_call_operand.hbm [shape: f32[16,16], index: 1, kind: input, shape index: {}]
  %s2 = inlined_call_operand.hbm [shape: f32[1,128], index: 2, kind: output, shape index: {}]
  %s3 = sld [smem:[#allocation0]]
  $region26: #{tpu_custom_call.1} parent=0
    _
  %s5 = ssub.s32 1, %s3
  %s6 = scalar_select 0, %s5, %s3
  $region1: #{tpu_custom_call.1} parent=0
    #allocation2 [shape = 'u8[8192]{0}', space=vmem, size = 0x2000, scoped, tag = 'input window, operand 0, single buffered']
    #allocation3 [shape = 's32[1]{0}', space=sflag, size = 0x4, scoped, tag = 'scoped memory for tpu_custom_call.1']
    #allocation4 [shape = 's32[1]{0}', space=sflag, size = 0x4, scoped, tag = 'scoped memory for tpu_custom_call.1']
    #allocation5 [shape = 'u8[8192]{0}', space=vmem, size = 0x2000, scoped, tag = 'input window, operand 1, single buffered']
    #allocation6 [shape = 's32[1]{0}', space=sflag, size = 0x4, scoped, tag = 'scoped memory for tpu_custom_call.1']
    #allocation7 [shape = 'u8[512]{0}', space=vmem, size = 0x400, scoped, tag = 'output window, operand 0, single buffered']
    %7 = vsyncpa [#allocation3], 0
    %8 = vsyncpa [#allocation6], 0
    %9 = vsyncpa [#allocation4], 0
    // Predicated region
    $region2: #{tpu_custom_call.1} parent=1 // pred_check
      _
    $region3: #{tpu_custom_call.1} parent=1 // pred_check_branch
      %11 = sbr.rel (0) target = $region5
    $region4: #{tpu_custom_call.1} parent=1 // pred_region
      %s13 = ssub.s32 256, 256
      %14 = vsyncadd [#allocation3], %s13
      %s15 = sshll.u32 [#allocation2], 4
      %s16 = int_to_ptr.vmem [resolvable:$true] %s15
      %21 = dma.hbm_to_vmem [thread:$0]  %s0, 256, %s16, [#allocation3], 128, 128, 8
    $region5: #{tpu_custom_call.1} parent=1 // pred_fallthru
      _
    // Predicated region
    $region6: #{tpu_custom_call.1} parent=1 // pred_check
      _
    $region7: #{tpu_custom_call.1} parent=1 // pred_check_branch
      %23 = sbr.rel (0) target = $region9
    $region8: #{tpu_custom_call.1} parent=1 // pred_region
      %s25 = ssub.s32 256, 256
      %26 = vsyncadd [#allocation6], %s25
      %s27 = sshll.u32 [#allocation5], 4
      %s28 = int_to_ptr.vmem [resolvable:$true] %s27
      %33 = dma.hbm_to_vmem [thread:$0]  %s1, 256, %s28, [#allocation6], 128, 128, 8
    $region9: #{tpu_custom_call.1} parent=1 // pred_fallthru
      _
    // Predicated region
    $region10: #{tpu_custom_call.1} parent=1 // pred_check
      _
    $region11: #{tpu_custom_call.1} parent=1 // pred_check_branch
      %35 = sbr.rel (0) target = $region13
    $region12: #{tpu_custom_call.1} parent=1 // pred_region
      %36 = dma.done [#allocation3], 256
    $region13: #{tpu_custom_call.1} parent=1 // pred_fallthru
      _
    // Predicated region
    $region14: #{tpu_custom_call.1} parent=1 // pred_check
      _
    $region15: #{tpu_custom_call.1} parent=1 // pred_check_branch
      %38 = sbr.rel (0) target = $region17
    $region16: #{tpu_custom_call.1} parent=1 // pred_region
      %39 = dma.done [#allocation6], 256
    $region17: #{tpu_custom_call.1} parent=1 // pred_fallthru
      _
    %v40 = vld [vmem:[#allocation2] sm:$0xff]
    %v41 = vld [vmem:[#allocation2 + $0x8] sm:$0xff]
    %v42 = vld [vmem:[#allocation5] sm:$0xff]
    %v43 = vld [vmem:[#allocation5 + $0x8] sm:$0xff]
    %vm44 = vcmask 130048
    %v46 = vsel %vm44, %v42, 0
    %v49 = vsel %vm44, %v43, 0
    %51 = vmatprep.subr.mxu0 0.0
    %52 = vmatpush1.msra.mxu0 %v40
    %53 = vmatprep.subr.mxu0 0.0
    %54 = vmatpush1.msra.mxu0 %v41
    %55 = vmatprep.subr.mxu0 0.0
    %56 = vmatpush1.msra.mxu0 0.0
    %57 = vmatprep.subr.mxu0 0.0
    %58 = vmatpush1.msra.mxu0 0.0
    %59 = vmatprep.subr.mxu0 0.0
    %60 = vmatpush1.msra.mxu0 0.0
    %61 = vmatprep.subr.mxu0 0.0
    %62 = vmatpush1.msra.mxu0 0.0
    %63 = vmatprep.subr.mxu0 0.0
    %64 = vmatpush1.msra.mxu0 0.0
    %65 = vmatprep.subr.mxu0 0.0
    %66 = vmatpush1.msra.mxu0 0.0
    %67 = vmatprep.subr.mxu0 0.0
    %68 = vmatpush1.msra.mxu0 0.0
    %69 = vmatprep.subr.mxu0 0.0
    %70 = vmatpush1.msra.mxu0 0.0
    %71 = vmatprep.subr.mxu0 0.0
    %72 = vmatpush1.msra.mxu0 0.0
    %73 = vmatprep.subr.mxu0 0.0
    %74 = vmatpush1.msra.mxu0 0.0
    %75 = vmatprep.subr.mxu0 0.0
    %76 = vmatpush1.msra.mxu0 0.0
    %77 = vmatprep.subr.mxu0 0.0
    %78 = vmatpush1.msra.mxu0 0.0
    %79 = vmatprep.subr.mxu0 0.0
    %80 = vmatpush1.msra.mxu0 0.0
    %81 = vmatprep.subr.mxu0 0.0
    %82 = vmatpush1.msra.mxu0 0.0
    %83 = vmatprep.subr.mxu0 0.0
    %84 = vmatpush1.msra.mxu0 0.0
    %85 = vmatprep.subr.mxu0 0.0
    %86 = vmatpush1.msra.mxu0 0.0
    %87 = vmatprep.subr.mxu0 0.0
    %88 = vmatpush1.msra.mxu0 0.0
    %89 = vmatprep.subr.mxu0 0.0
    %90 = vmatpush1.msra.mxu0 0.0
    %91 = vmatprep.subr.mxu0 0.0
    %92 = vmatpush1.msra.mxu0 0.0
    %93 = vmatprep.subr.mxu0 0.0
    %94 = vmatpush1.msra.mxu0 0.0
    %95 = vmatprep.subr.mxu0 0.0
    %96 = vmatpush1.msra.mxu0 0.0
    %97 = vmatprep.subr.mxu0 0.0
    %98 = vmatpush1.msra.mxu0 0.0
    %99 = vmatprep.subr.mxu0 0.0
    %100 = vmatpush1.msra.mxu0 0.0
    %101 = vmatprep.subr.mxu0 0.0
    %102 = vmatpush1.msra.mxu0 0.0
    %103 = vmatprep.subr.mxu0 0.0
    %104 = vmatpush1.msra.mxu0 0.0
    %105 = vmatprep.subr.mxu0 0.0
    %106 = vmatpush1.msra.mxu0 0.0
    %107 = vmatprep.subr.mxu0 0.0
    %108 = vmatpush1.msra.mxu0 0.0
    %109 = vmatprep.subr.mxu0 0.0
    %110 = vmatpush1.msra.mxu0 0.0
    %111 = vmatprep.subr.mxu0 0.0
    %112 = vmatpush1.msra.mxu0 0.0
    %113 = vmatprep.subr.mxu0 0.0
    %114 = vmatpush1.msra.mxu0 0.0
    %115 = vmatprep.mubr.f32.mxu0 0.0
    %116 = vmatmul.mubr.f32.gmra.mrb[0].mxu0 %v46
    %v117 = vpop.f32.mrb[0].mxu0
    %v118 = vadd.f32 0.0, %v117
    %v119 = vpop.f32.mrb[0].mxu0
    %120 = vmatprep.mubr.f32.mxu0 0.0
    %121 = vmatmul.mubr.f32.gmra.mrb[0].mxu0 %v49
    %v122 = vpop.f32.mrb[0].mxu0
    %v123 = vadd.f32 0.0, %v122
    %v124 = vpop.f32.mrb[0].mxu0
    %125 = vdwg.mxu0
    %v126 = vmul.f32 %v118, %v40
    %v127 = vmul.f32 %v123, %v41
    %v128 = vadd.f32 %v126, %v127
    %v129 = vrot.slane %v128, 4
    %v130 = vadd.f32 %v128, %v129
    %v131 = vrot.slane %v130, 2
    %v132 = vadd.f32 %v130, %v131
    %v133 = vrot.slane %v132, 1
    %v134 = vadd.f32 %v132, %v133
    %135 = vst [vmem:[#allocation7] sm:$0x1] %v134
    // Predicated region
    $region18: #{tpu_custom_call.1} parent=1 // pred_check
      _
    $region19: #{tpu_custom_call.1} parent=1 // pred_check_branch
      %137 = sbr.rel (0) target = $region21
    $region20: #{tpu_custom_call.1} parent=1 // pred_region
      %s139 = ssub.s32 16, 16
      %140 = vsyncadd [#allocation4], %s139
      %s142 = sshll.u32 [#allocation7], 4
      %s143 = int_to_ptr.vmem [resolvable:$true] %s142
      %145 = dma.vmem_to_hbm [thread:$0]  %s143, 16, %s2, [#allocation4]
    $region21: #{tpu_custom_call.1} parent=1 // pred_fallthru
      _
    // Predicated region
    $region22: #{tpu_custom_call.1} parent=1 // pred_check
      _
    $region23: #{tpu_custom_call.1} parent=1 // pred_check_branch
      %147 = sbr.rel (0) target = $region25
    $region24: #{tpu_custom_call.1} parent=1 // pred_region
      %148 = dma.done [#allocation4], 16
    $region25: #{tpu_custom_call.1} parent=1 // pred_fallthru
      _
    %149 = vsyncpa [#allocation3], 1
    %150 = vsyncpa [#allocation6], 1
    %151 = vsyncpa [#allocation4], 1

</llo_original>
